<compile_context>
chip_gen: v7x
topology: tpu7x:2x2x1
jax: 0.10.0
libtpu: 0.0.40
codegen_flags: <defaults>
</compile_context>

<pallas_src>
import jax
import jax.numpy as jnp
from jax.experimental import pallas as pl
from jax.experimental.pallas import tpu as pltpu

HIDDEN = 100          # true hidden width of Layer1
OUT = 1               # true output width of Layer2
HPAD = 128            # lane-dense padded hidden width


def _softplus_beta10(z):
    """Numerically stable Softplus(beta=10): (max(bz,0)+log1p(exp(-|bz|)))/10."""
    bz = 10.0 * z
    return (jnp.maximum(bz, 0.0) + jnp.log1p(jnp.exp(-jnp.abs(bz)))) * 0.1


def _mask_hidden_pad(x1):
    """Zero the padded hidden lanes (cols >= HIDDEN) so W2 pad lanes can't leak."""
    col = jax.lax.broadcasted_iota(jnp.int32, x1.shape, 1)
    return jnp.where(col < HIDDEN, x1, 0.0)


# ----------------------------------------------------------------------------
# Path A: small K — single block over pred_dim, grid = (batch tiles,).
# No accumulator scratch, no init/finalize phases.
# ----------------------------------------------------------------------------
def _fwd_kernel_single(x_ref, w1_ref, b1_ref, w2_ref, b2_ref, y_ref, reg_ref):
    i = pl.program_id(0)

    xt = x_ref[...].astype(w1_ref.dtype)          # no-op when dtypes match
    z = jnp.dot(xt, w1_ref[...], preferred_element_type=jnp.float32)
    z = z + b1_ref[...]
    x1 = _mask_hidden_pad(_softplus_beta10(z))    # (tm, HPAD)

    w2v = w2_ref[...].astype(jnp.float32)         # (1, HPAD) row
    y = jnp.sum(x1 * w2v, axis=-1, keepdims=True) + b2_ref[...]
    y_ref[...] = y.astype(y_ref.dtype)

    # Fused L1 regularizer — computed once (batch tile 0 only); W1/W2 are
    # already resident in VMEM so this costs no extra HBM traffic.
    @pl.when(i == 0)
    def _():
        r = (jnp.sum(jnp.abs(w1_ref[...].astype(jnp.float32)))
             + jnp.sum(jnp.abs(w2v)))
        reg_ref[...] = jnp.broadcast_to(r, reg_ref.shape)

    @pl.when(i != 0)
    def _():
        reg_ref[...] = jnp.zeros_like(reg_ref)


# ----------------------------------------------------------------------------
# Path B: large K — grid = (batch tiles [parallel], K tiles [arbitrary]).
# f32 accumulator in VMEM scratch, bias-initialized; reg accumulated per K
# step (W1) + epilogue (W2) on batch tile 0 only.
# ----------------------------------------------------------------------------
def _fwd_kernel_tiled(x_ref, w1_ref, b1_ref, w2_ref, b2_ref, y_ref, reg_ref,
                      acc_ref):
    i = pl.program_id(0)
    k = pl.program_id(1)

    @pl.when(k == 0)
    def _():
        acc_ref[...] = jnp.broadcast_to(b1_ref[...], acc_ref.shape)  # bias init
        reg_ref[...] = jnp.zeros_like(reg_ref)

    xt = x_ref[...].astype(w1_ref.dtype)
    w1t = w1_ref[...]
    acc_ref[...] += jnp.dot(xt, w1t, preferred_element_type=jnp.float32)

    @pl.when(i == 0)
    def _():
        reg_ref[...] += jnp.sum(jnp.abs(w1t.astype(jnp.float32)))

    @pl.when(k == pl.num_programs(1) - 1)
    def _():
        x1 = _mask_hidden_pad(_softplus_beta10(acc_ref[...]))
        w2v = w2_ref[...].astype(jnp.float32)
        y = jnp.sum(x1 * w2v, axis=-1, keepdims=True) + b2_ref[...]
        y_ref[...] = y.astype(y_ref.dtype)

        @pl.when(i == 0)
        def _():
            reg_ref[...] += jnp.sum(jnp.abs(w2v))


# ----------------------------------------------------------------------------
# Wrapper.
# ----------------------------------------------------------------------------
def predictor_forward(x, params, *, single_k_limit=2048):
    w1, b1, w2, b2 = params["w1"], params["b1"], params["w2"], params["b2"]
    B, Din = x.shape
    Din_pad = w1.shape[0]                 # already a multiple of 128 (init)

    if Din != Din_pad:                    # zero-pad K once; W1 pad rows are 0
        x = jnp.pad(x, ((0, 0), (0, Din_pad - Din)))

    # Batch tile: big tiles minimize W1 re-streaming; only split (>=2 tiles
    # for v7x's 2 TCs) when each tile is still >=128 rows so x traffic is not
    # dwarfed by duplicated W1 reads.
    tm_cap = min(512, B // 2) if B >= 256 else B
    tm = B
    for c in (512, 256, 128, 64, 32, 16, 8):
        if c <= tm_cap and B % c == 0:
            tm = c
            break
    n_bt = B // tm

    # K tile: single block for small pred_dim, else 128..2048 dividing Din_pad.
    if Din_pad <= single_k_limit:
        tk = Din_pad
    else:
        tk = 128
        for c in (2048, 1024, 512, 256):
            if Din_pad % c == 0:
                tk = c
                break
    n_k = Din_pad // tk

    out_shape = (
        jax.ShapeDtypeStruct((B, OUT), jnp.float32),          # y (true width)
        jax.ShapeDtypeStruct((n_bt * 8, 128), jnp.float32),   # per-tile reg blocks
    )
    compiler_params = pltpu.CompilerParams(
        dimension_semantics=("parallel",) if n_k == 1 else ("parallel", "arbitrary"),
        vmem_limit_bytes=32 * 1024 * 1024,
    )

    if n_k == 1:
        y, reg = pl.pallas_call(
            _fwd_kernel_single,
            out_shape=out_shape,
            grid=(n_bt,),
            in_specs=[
                pl.BlockSpec((tm, Din_pad), lambda i: (i, 0)),   # x
                pl.BlockSpec((Din_pad, HPAD), lambda i: (0, 0)), # W1
                pl.BlockSpec((1, HPAD), lambda i: (0, 0)),       # b1
                pl.BlockSpec((1, HPAD), lambda i: (0, 0)),       # W2 (row)
                pl.BlockSpec((1, 1), lambda i: (0, 0)),          # b2
            ],
            out_specs=[
                pl.BlockSpec((tm, OUT), lambda i: (i, 0)),
                pl.BlockSpec((8, 128), lambda i: (i, 0)),
            ],
            compiler_params=compiler_params,
        )(x, w1, b1, w2, b2)
    else:
        y, reg = pl.pallas_call(
            _fwd_kernel_tiled,
            out_shape=out_shape,
            grid=(n_bt, n_k),
            in_specs=[
                pl.BlockSpec((tm, tk), lambda i, k: (i, k)),     # x
                pl.BlockSpec((tk, HPAD), lambda i, k: (k, 0)),   # W1
                pl.BlockSpec((1, HPAD), lambda i, k: (0, 0)),    # b1
                pl.BlockSpec((1, HPAD), lambda i, k: (0, 0)),    # W2 (row)
                pl.BlockSpec((1, 1), lambda i, k: (0, 0)),       # b2
            ],
            out_specs=[
                pl.BlockSpec((tm, OUT), lambda i, k: (i, 0)),
                pl.BlockSpec((8, 128), lambda i, k: (i, 0)),
            ],
            scratch_shapes=[pltpu.VMEM((tm, HPAD), jnp.float32)],
            compiler_params=compiler_params,
        )(x, w1, b1, w2, b2)

    return y, reg[0, 0]


# ----------------------------------------------------------------------------
# Parameter init matching the PyTorch module (uniform(-s, s), s=sqrt(6/(i+o))),
# stored once, lane-dense and zero-padded:
#   W1: (ceil(pred_dim/128)*128, 128), b1: (1,128), W2 row: (1,128), b2: (1,1).
# ----------------------------------------------------------------------------
def init_predictor_params(key, pred_dim, *, weights_dtype=jnp.float32):
    din_pad = ((pred_dim + 127) // 128) * 128
    k1, k2, k3, k4 = jax.random.split(key, 4)
    s1 = (6.0 / (pred_dim + HIDDEN)) ** 0.5
    s2 = (6.0 / (HIDDEN + OUT)) ** 0.5
    w1 = jax.random.uniform(k1, (pred_dim, HIDDEN), jnp.float32, -s1, s1)
    b1 = jax.random.uniform(k2, (HIDDEN,), jnp.float32, -s1, s1)
    w2 = jax.random.uniform(k3, (HIDDEN, OUT), jnp.float32, -s2, s2)
    b2 = jax.random.uniform(k4, (OUT,), jnp.float32, -s2, s2)
    w1p = jnp.zeros((din_pad, HPAD), jnp.float32).at[:pred_dim, :HIDDEN].set(w1)
    w2p = jnp.zeros((1, HPAD), jnp.float32).at[0, :HIDDEN].set(w2[:, 0])
    return {
        "w1": w1p.astype(weights_dtype),
        "b1": jnp.zeros((1, HPAD), jnp.float32).at[0, :HIDDEN].set(b1),
        "w2": w2p.astype(weights_dtype),
        "b2": jnp.reshape(b2, (1, 1)).astype(jnp.float32),
    }


def _ref_forward(x, params):
    """Plain-JAX reference of Predictor.forward (sanity check)."""
    Din = x.shape[1]
    w1 = params["w1"][:Din, :HIDDEN].astype(jnp.float32)
    b1 = params["b1"][0, :HIDDEN]
    w2 = params["w2"][0, :HIDDEN].astype(jnp.float32)
    b2 = params["b2"][0, 0]
    x1 = jax.nn.softplus(10.0 * (x @ w1 + b1)) / 10.0
    x2 = x1 @ w2[:, None] + b2
    reg = jnp.sum(jnp.abs(w1)) + jnp.sum(jnp.abs(w2))
    return x2, reg


def _check(x, params, fwd):
    x2, reg = fwd(x, params)
    jax.block_until_ready((x2, reg))
    x2_ref, reg_ref = _ref_forward(x, params)
    assert x2.shape == (x.shape[0], OUT)
    assert reg.shape == ()
    assert bool(jnp.all(jnp.isfinite(x2))) and bool(jnp.isfinite(reg))
    assert bool(jnp.allclose(x2, x2_ref, rtol=1e-3, atol=1e-3))
    assert bool(jnp.allclose(reg, reg_ref, rtol=1e-3, atol=1e-3))


if __name__ == "__main__":
    key = jax.random.PRNGKey(0)
    kx1, kp1, kx2, kp2 = jax.random.split(key, 4)

    # 1) Small problem -> single-block path (grid collapses to one point).
    batch, pred_dim = 16, 256
    x = jax.random.normal(kx1, (batch, pred_dim), jnp.float32)
    params = init_predictor_params(kp1, pred_dim)
    _check(x, params, jax.jit(predictor_forward))

    # 2) Multi batch-tile + tiled-K path (forced small K block to exercise it).
    batch2, pred_dim2 = 256, 512
    x2in = jax.random.normal(kx2, (batch2, pred_dim2), jnp.float32)
    params2 = init_predictor_params(kp2, pred_dim2)
    fwd_tiled = jax.jit(lambda a, p: predictor_forward(a, p, single_k_limit=256))
    _check(x2in, params2, fwd_tiled)

    print("KERNEL_OK")
</pallas_src>

<mosaic_0001>
module attributes {stable_mosaic.version = 11 : i64} {
  func.func @_fwd_kernel_single(%arg0: i32, %arg1: memref<16x256xf32, #tpu.memory_space<vmem>>, %arg2: memref<256x128xf32, #tpu.memory_space<vmem>>, %arg3: memref<1x128xf32, #tpu.memory_space<vmem>>, %arg4: memref<1x128xf32, #tpu.memory_space<vmem>>, %arg5: memref<1x1xf32, #tpu.memory_space<vmem>>, %arg6: memref<16x1xf32, #tpu.memory_space<vmem>>, %arg7: memref<8x128xf32, #tpu.memory_space<vmem>>) attributes {dimension_semantics = [#tpu.dimension_semantics<parallel>], iteration_bounds = array<i64: 1>, scalar_prefetch = 0 : i64, scratch_operands = 0 : i64, tpu.core_type = #tpu.core_type<tc>, window_params = [{transform_indices = @transform_0, window_bounds = array<i64: 16, 256>}, {pipeline_mode = #tpu.pipeline_mode<synchronous>, transform_indices = @transform_1, window_bounds = array<i64: 256, 128>}, {pipeline_mode = #tpu.pipeline_mode<synchronous>, transform_indices = @transform_2, window_bounds = array<i64: 1, 128>}, {pipeline_mode = #tpu.pipeline_mode<synchronous>, transform_indices = @transform_3, window_bounds = array<i64: 1, 128>}, {pipeline_mode = #tpu.pipeline_mode<synchronous>, transform_indices = @transform_4, window_bounds = array<i64: 1, 1>}, {transform_indices = @transform_5, window_bounds = array<i64: 16, 1>}, {transform_indices = @transform_6, window_bounds = array<i64: 8, 128>}]} {
    %c0 = arith.constant 0 : index
    %c0_0 = arith.constant 0 : index
    %0 = vector.load %arg1[%c0, %c0_0] : memref<16x256xf32, #tpu.memory_space<vmem>>, vector<16x256xf32>
    %c0_1 = arith.constant 0 : index
    %c0_2 = arith.constant 0 : index
    %1 = vector.load %arg2[%c0_1, %c0_2] : memref<256x128xf32, #tpu.memory_space<vmem>>, vector<256x128xf32>
    %cst = arith.constant dense<0.000000e+00> : vector<16x128xf32>
    %2 = tpu.matmul %0, %1, %cst {dimension_numbers = #tpu.dot_dimension_numbers<[1], [0], [0], [1], [0, 0, 1, 1], [], []>} : vector<16x256xf32>, vector<256x128xf32>, vector<16x128xf32> -> vector<16x128xf32>
    %c0_3 = arith.constant 0 : index
    %c0_4 = arith.constant 0 : index
    %3 = vector.load %arg3[%c0_3, %c0_4] : memref<1x128xf32, #tpu.memory_space<vmem>>, vector<1x128xf32>
    %4 = vector.broadcast %3 : vector<1x128xf32> to vector<16x128xf32>
    %5 = arith.addf %2, %4 : vector<16x128xf32>
    %cst_5 = arith.constant 1.000000e+01 : f32
    %6 = vector.broadcast %cst_5 : f32 to vector<16x128xf32>
    %7 = arith.mulf %6, %5 : vector<16x128xf32>
    %cst_6 = arith.constant 0.000000e+00 : f32
    %8 = vector.broadcast %cst_6 : f32 to vector<16x128xf32>
    %9 = arith.maximumf %7, %8 : vector<16x128xf32>
    %10 = math.absf %7 : vector<16x128xf32>
    %cst_7 = arith.constant 0.000000e+00 : f32
    %11 = vector.broadcast %cst_7 : f32 to vector<16x128xf32>
    %12 = arith.subf %11, %10 : vector<16x128xf32>
    %13 = math.exp %12 : vector<16x128xf32>
    %14 = math.log1p %13 : vector<16x128xf32>
    %15 = arith.addf %9, %14 : vector<16x128xf32>
    %cst_8 = arith.constant 1.000000e-01 : f32
    %16 = vector.broadcast %cst_8 : f32 to vector<16x128xf32>
    %17 = arith.mulf %15, %16 : vector<16x128xf32>
    %18 = tpu.iota {dimensions = array<i32: 1>} : vector<16x128xi32>
    %c100_i32 = arith.constant 100 : i32
    %19 = vector.broadcast %c100_i32 : i32 to vector<16x128xi32>
    %20 = arith.cmpi slt, %18, %19 : vector<16x128xi32>
    %cst_9 = arith.constant 0.000000e+00 : f32
    %21 = vector.broadcast %cst_9 : f32 to vector<16x128xf32>
    %22 = arith.select %20, %17, %21 : vector<16x128xi1>, vector<16x128xf32>
    %c0_10 = arith.constant 0 : index
    %c0_11 = arith.constant 0 : index
    %23 = vector.load %arg4[%c0_10, %c0_11] : memref<1x128xf32, #tpu.memory_space<vmem>>, vector<1x128xf32>
    %24 = vector.broadcast %23 : vector<1x128xf32> to vector<16x128xf32>
    %25 = arith.mulf %22, %24 : vector<16x128xf32>
    %cst_12 = arith.constant dense<0.000000e+00> : vector<16xf32>
    %26 = vector.multi_reduction <add>, %25, %cst_12 [1] : vector<16x128xf32> to vector<16xf32>
    %27 = vector.shape_cast %26 : vector<16xf32> to vector<16x1xf32>
    %c0_13 = arith.constant 0 : index
    %c0_14 = arith.constant 0 : index
    %28 = vector.load %arg5[%c0_13, %c0_14] : memref<1x1xf32, #tpu.memory_space<vmem>>, vector<1x1xf32>
    %29 = vector.broadcast %28 : vector<1x1xf32> to vector<16x1xf32>
    %30 = arith.addf %27, %29 : vector<16x1xf32>
    %c0_15 = arith.constant 0 : index
    %c0_16 = arith.constant 0 : index
    %31 = vector.load %arg6[%c0_15, %c0_16] : memref<16x1xf32, #tpu.memory_space<vmem>>, vector<16x1xf32>
    tpu.vector_store %arg6[%c0_15, %c0_16], %30 {strides = array<i32>} : memref<16x1xf32, #tpu.memory_space<vmem>>, vector<16x1xf32>,
    %c0_i32 = arith.constant 0 : i32
    %32 = arith.cmpi eq, %arg0, %c0_i32 : i32
    %33 = arith.extui %32 : i1 to i32
    %c0_i32_17 = arith.constant 0 : i32
    %34 = arith.cmpi ne, %33, %c0_i32_17 : i32
    scf.if %34 {
      %c0_20 = arith.constant 0 : index
      %c0_21 = arith.constant 0 : index
      %38 = vector.load %arg2[%c0_20, %c0_21] : memref<256x128xf32, #tpu.memory_space<vmem>>, vector<256x128xf32>
      %39 = math.absf %38 : vector<256x128xf32>
      %40 = vector.shape_cast %39 : vector<256x128xf32> to vector<1x256x128xf32>
      %cst_22 = arith.constant dense<0.000000e+00> : vector<1xf32>
      %41 = vector.multi_reduction <add>, %40, %cst_22 [1, 2] : vector<1x256x128xf32> to vector<1xf32>
      %42 = vector.shape_cast %41 : vector<1xf32> to vector<1x1x1xf32>
      %43 = vector.extract %42[0, 0, 0] : f32 from vector<1x1x1xf32>
      %44 = math.absf %23 : vector<1x128xf32>
      %45 = vector.shape_cast %44 : vector<1x128xf32> to vector<1x1x128xf32>
      %cst_23 = arith.constant dense<0.000000e+00> : vector<1xf32>
      %46 = vector.multi_reduction <add>, %45, %cst_23 [1, 2] : vector<1x1x128xf32> to vector<1xf32>
      %47 = vector.shape_cast %46 : vector<1xf32> to vector<1x1x1xf32>
      %48 = vector.extract %47[0, 0, 0] : f32 from vector<1x1x1xf32>
      %49 = arith.addf %43, %48 : f32
      %50 = vector.broadcast %49 : f32 to vector<8x128xf32>
      %c0_24 = arith.constant 0 : index
      %c0_25 = arith.constant 0 : index
      %51 = vector.load %arg7[%c0_24, %c0_25] : memref<8x128xf32, #tpu.memory_space<vmem>>, vector<8x128xf32>
      tpu.vector_store %arg7[%c0_24, %c0_25], %50 {strides = array<i32>} : memref<8x128xf32, #tpu.memory_space<vmem>>, vector<8x128xf32>,
    } else {
    }
    %c0_i32_18 = arith.constant 0 : i32
    %35 = arith.cmpi ne, %arg0, %c0_i32_18 : i32
    %36 = arith.extui %35 : i1 to i32
    %c0_i32_19 = arith.constant 0 : i32
    %37 = arith.cmpi ne, %36, %c0_i32_19 : i32
    scf.if %37 {
      %cst_20 = arith.constant 0.000000e+00 : f32
      %38 = vector.broadcast %cst_20 : f32 to vector<8x128xf32>
      %c0_21 = arith.constant 0 : index
      %c0_22 = arith.constant 0 : index
      %39 = vector.load %arg7[%c0_21, %c0_22] : memref<8x128xf32, #tpu.memory_space<vmem>>, vector<8x128xf32>
      tpu.vector_store %arg7[%c0_21, %c0_22], %38 {strides = array<i32>} : memref<8x128xf32, #tpu.memory_space<vmem>>, vector<8x128xf32>,
    } else {
    }
    return
  }
  func.func @transform_0(%arg0: i32) -> (i32, i32) {
    %c0_i32 = arith.constant 0 : i32
    %c0_i32_0 = arith.constant 0 : i32
    return %arg0, %c0_i32 : i32, i32
  }
  func.func @transform_1(%arg0: i32) -> (i32, i32) {
    %c0_i32 = arith.constant 0 : i32
    %c0_i32_0 = arith.constant 0 : i32
    %c0_i32_1 = arith.constant 0 : i32
    return %c0_i32, %c0_i32_0 : i32, i32
  }
  func.func @transform_2(%arg0: i32) -> (i32, i32) {
    %c0_i32 = arith.constant 0 : i32
    %c0_i32_0 = arith.constant 0 : i32
    %c0_i32_1 = arith.constant 0 : i32
    return %c0_i32, %c0_i32_0 : i32, i32
  }
  func.func @transform_3(%arg0: i32) -> (i32, i32) {
    %c0_i32 = arith.constant 0 : i32
    %c0_i32_0 = arith.constant 0 : i32
    %c0_i32_1 = arith.constant 0 : i32
    return %c0_i32, %c0_i32_0 : i32, i32
  }
  func.func @transform_4(%arg0: i32) -> (i32, i32) {
    %c0_i32 = arith.constant 0 : i32
    %c0_i32_0 = arith.constant 0 : i32
    %c0_i32_1 = arith.constant 0 : i32
    return %c0_i32, %c0_i32_0 : i32, i32
  }
  func.func @transform_5(%arg0: i32) -> (i32, i32) {
    %c0_i32 = arith.constant 0 : i32
    %c0_i32_0 = arith.constant 0 : i32
    return %arg0, %c0_i32 : i32, i32
  }
  func.func @transform_6(%arg0: i32) -> (i32, i32) {
    %c0_i32 = arith.constant 0 : i32
    %c0_i32_0 = arith.constant 0 : i32
    return %arg0, %c0_i32 : i32, i32
  }
}

</mosaic_0001>

<llo_original>
// kernel: predictor_forward.1
$region0: #{predictor_forward.1}
  #allocation0 [shape = 'u32[]', space=smem, size = 0x4, offset = 0x4, fixed_abs, tag = 'smem constant byte address 0x4 - core index']
  #allocation1 [shape = 'u32[144,128]{1,0:T(1,128)}', space=vmem, size = 0x12000, scoped, tag = 'internal scratch']
  #allocation2 [shape = 'f32[1,1]{1,0:T(1,128)S(1)}', space=vmem, size = 0x200, scoped, tag = 'scoped memory for predictor_forward.1']
  %s0 = inlined_call_operand.hbm [shape: f32[16,256], index: 0, kind: input, shape index: {}]
  %s1 = inlined_call_operand.hbm [shape: f32[256,128], index: 1, kind: input, shape index: {}]
  %s2 = inlined_call_operand.vmem [shape: f32[1,128], index: 2, kind: input, shape index: {}]
  %s3 = inlined_call_operand.vmem [shape: f32[1,128], index: 3, kind: input, shape index: {}]
  %s4 = inlined_call_operand.<no memory space> [shape: f32[1,1], index: 4, kind: input, shape index: {}]
  %s5 = inlined_call_operand.vmem [shape: f32[16,1], index: 5, kind: output, shape index: {0}]
  %s6 = inlined_call_operand.vmem [shape: f32[8,128], index: 6, kind: output, shape index: {1}]
  %7 = xla_tuple %s5, %s6
  %s8 = sld [smem:[#allocation0]]
  $region54: #{predictor_forward.1} parent=0
    _
  %s10 = ssub.s32 1, %s8
  %s11 = scalar_select 0, %s10, %s8
  %v12 = vstv %s4
  %13 = vst [vmem:[#allocation2] sm:$0x1] %v12
  $region1: #{predictor_forward.1} parent=0
    #allocation3 [shape = 'u8[16384]{0}', space=vmem, size = 0x4000, scoped, tag = 'input window, operand 0, single buffered']
    #allocation4 [shape = 's32[1]{0}', space=sflag, size = 0x4, scoped, tag = 'scoped memory for predictor_forward.1']
    #allocation5 [shape = 'u8[131072]{0}', space=vmem, size = 0x20000, scoped, tag = 'input window, operand 1, single buffered']
    #allocation6 [shape = 's32[1]{0}', space=sflag, size = 0x4, scoped, tag = 'scoped memory for predictor_forward.1']
    %14 = vsyncpa [#allocation4], 0
    %15 = vsyncpa [#allocation6], 0
    // Predicated region
    $region2: #{predictor_forward.1} parent=1 // pred_check
      _
    $region3: #{predictor_forward.1} parent=1 // pred_check_branch
      %17 = sbr.rel (0) target = $region5
    $region4: #{predictor_forward.1} parent=1 // pred_region
      %s19 = ssub.s32 512, 512
      %20 = vsyncadd [#allocation4], %s19
      %s21 = sshll.u32 [#allocation3], 4
      %s22 = int_to_ptr.vmem [resolvable:$true] %s21
      %27 = dma.hbm_to_vmem [thread:$0]  %s0, 512, %s22, [#allocation4], 256, 256, 16
    $region5: #{predictor_forward.1} parent=1 // pred_fallthru
      _
    // Predicated region
    $region6: #{predictor_forward.1} parent=1 // pred_check
      _
    $region7: #{predictor_forward.1} parent=1 // pred_check_branch
      %29 = sbr.rel (0) target = $region9
    $region8: #{predictor_forward.1} parent=1 // pred_region
      %s31 = ssub.s32 4096, 4096
      %32 = vsyncadd [#allocation6], %s31
      %s33 = sshll.u32 [#allocation5], 4
      %s34 = int_to_ptr.vmem [resolvable:$true] %s33
      %39 = dma.hbm_to_vmem [thread:$0]  %s1, 4096, %s34, [#allocation6], 128, 128, 8
    $region9: #{predictor_forward.1} parent=1 // pred_fallthru
      _
    // Predicated region
    $region10: #{predictor_forward.1} parent=1 // pred_check
      _
    $region11: #{predictor_forward.1} parent=1 // pred_check_branch
      %41 = sbr.rel (0) target = $region13
    $region12: #{predictor_forward.1} parent=1 // pred_region
      _
    $region13: #{predictor_forward.1} parent=1 // pred_fallthru
      _
    // Predicated region
    $region14: #{predictor_forward.1} parent=1 // pred_check
      _
    $region15: #{predictor_forward.1} parent=1 // pred_check_branch
      %43 = sbr.rel (0) target = $region17
    $region16: #{predictor_forward.1} parent=1 // pred_region
      _
    $region17: #{predictor_forward.1} parent=1 // pred_fallthru
      _
    // Predicated region
    $region18: #{predictor_forward.1} parent=1 // pred_check
      _
    $region19: #{predictor_forward.1} parent=1 // pred_check_branch
      %45 = sbr.rel (0) target = $region21
    $region20: #{predictor_forward.1} parent=1 // pred_region
      _
    $region21: #{predictor_forward.1} parent=1 // pred_fallthru
      _
    // Predicated region
    $region22: #{predictor_forward.1} parent=1 // pred_check
      _
    $region23: #{predictor_forward.1} parent=1 // pred_check_branch
      %47 = sbr.rel (0) target = $region25
    $region24: #{predictor_forward.1} parent=1 // pred_region
      %48 = dma.done [#allocation4], 512
    $region25: #{predictor_forward.1} parent=1 // pred_fallthru
      _
    // Predicated region
    $region26: #{predictor_forward.1} parent=1 // pred_check
      _
    $region27: #{predictor_forward.1} parent=1 // pred_check_branch
      %50 = sbr.rel (0) target = $region29
    $region28: #{predictor_forward.1} parent=1 // pred_region
      %51 = dma.done [#allocation6], 4096
    $region29: #{predictor_forward.1} parent=1 // pred_fallthru
      _
    %v52 = vld [vmem:[#allocation3] sm:$0xff]
    %v53 = vld [vmem:[#allocation3 + $0x8] sm:$0xff]
    %v54 = vld [vmem:[#allocation3 + $0x10] sm:$0xff]
    %v55 = vld [vmem:[#allocation3 + $0x18] sm:$0xff]
    %v56 = vld [vmem:[#allocation5] sm:$0xff]
    %v57 = vld [vmem:[#allocation5 + $0x8] sm:$0xff]
    %v58 = vld [vmem:[#allocation5 + $0x10] sm:$0xff]
    %v59 = vld [vmem:[#allocation5 + $0x18] sm:$0xff]
    %v60 = vld [vmem:[#allocation5 + $0x20] sm:$0xff]
    %v61 = vld [vmem:[#allocation5 + $0x28] sm:$0xff]
    %v62 = vld [vmem:[#allocation5 + $0x30] sm:$0xff]
    %v63 = vld [vmem:[#allocation5 + $0x38] sm:$0xff]
    %v64 = vld [vmem:[#allocation5 + $0x40] sm:$0xff]
    %v65 = vld [vmem:[#allocation5 + $0x48] sm:$0xff]
    %v66 = vld [vmem:[#allocation5 + $0x50] sm:$0xff]
    %v67 = vld [vmem:[#allocation5 + $0x58] sm:$0xff]
    %v68 = vld [vmem:[#allocation5 + $0x60] sm:$0xff]
    %v69 = vld [vmem:[#allocation5 + $0x68] sm:$0xff]
    %v70 = vld [vmem:[#allocation5 + $0x70] sm:$0xff]
    %v71 = vld [vmem:[#allocation5 + $0x78] sm:$0xff]
    %v72 = vld [vmem:[#allocation5 + $0x80] sm:$0xff]
    %v73 = vld [vmem:[#allocation5 + $0x88] sm:$0xff]
    %v74 = vld [vmem:[#allocation5 + $0x90] sm:$0xff]
    %v75 = vld [vmem:[#allocation5 + $0x98] sm:$0xff]
    %v76 = vld [vmem:[#allocation5 + $0xa0] sm:$0xff]
    %v77 = vld [vmem:[#allocation5 + $0xa8] sm:$0xff]
    %v78 = vld [vmem:[#allocation5 + $0xb0] sm:$0xff]
    %v79 = vld [vmem:[#allocation5 + $0xb8] sm:$0xff]
    %v80 = vld [vmem:[#allocation5 + $0xc0] sm:$0xff]
    %v81 = vld [vmem:[#allocation5 + $0xc8] sm:$0xff]
    %v82 = vld [vmem:[#allocation5 + $0xd0] sm:$0xff]
    %v83 = vld [vmem:[#allocation5 + $0xd8] sm:$0xff]
    %v84 = vld [vmem:[#allocation5 + $0xe0] sm:$0xff]
    %v85 = vld [vmem:[#allocation5 + $0xe8] sm:$0xff]
    %v86 = vld [vmem:[#allocation5 + $0xf0] sm:$0xff]
    %v87 = vld [vmem:[#allocation5 + $0xf8] sm:$0xff]
    %v88 = vld [vmem:[%s2] sm:$0x1]
    %v90 = vlaneseq
    %v91 = vshrl.u32 %v90, 7
    %v92 = vsub.s32 0, %v91
    %v93 = vrot.slane %v88, %v92
    %95 = vmatprep.subr.mxu0 0.0
    %96 = vmatpush1.msra.mxu0 %v56
    %97 = vmatprep.subr.mxu0 0.0
    %98 = vmatpush1.msra.mxu0 %v57
    %99 = vmatprep.subr.mxu0 0.0
    %100 = vmatpush1.msra.mxu0 %v58
    %101 = vmatprep.subr.mxu0 0.0
    %102 = vmatpush1.msra.mxu0 %v59
    %103 = vmatprep.subr.mxu0 0.0
    %104 = vmatpush1.msra.mxu0 %v60
    %105 = vmatprep.subr.mxu0 0.0
    %106 = vmatpush1.msra.mxu0 %v61
    %107 = vmatprep.subr.mxu0 0.0
    %108 = vmatpush1.msra.mxu0 %v62
    %109 = vmatprep.subr.mxu0 0.0
    %110 = vmatpush1.msra.mxu0 %v63
    %111 = vmatprep.subr.mxu0 0.0
    %112 = vmatpush1.msra.mxu0 %v64
    %113 = vmatprep.subr.mxu0 0.0
    %114 = vmatpush1.msra.mxu0 %v65
    %115 = vmatprep.subr.mxu0 0.0
    %116 = vmatpush1.msra.mxu0 %v66
    %117 = vmatprep.subr.mxu0 0.0
    %118 = vmatpush1.msra.mxu0 %v67
    %119 = vmatprep.subr.mxu0 0.0
    %120 = vmatpush1.msra.mxu0 %v68
    %121 = vmatprep.subr.mxu0 0.0
    %122 = vmatpush1.msra.mxu0 %v69
    %123 = vmatprep.subr.mxu0 0.0
    %124 = vmatpush1.msra.mxu0 %v70
    %125 = vmatprep.subr.mxu0 0.0
    %126 = vmatpush1.msra.mxu0 %v71
    %127 = vmatprep.subr.mxu0 0.0
    %128 = vmatpush1.msra.mxu0 %v72
    %129 = vmatprep.subr.mxu0 0.0
    %130 = vmatpush1.msra.mxu0 %v73
    %131 = vmatprep.subr.mxu0 0.0
    %132 = vmatpush1.msra.mxu0 %v74
    %133 = vmatprep.subr.mxu0 0.0
    %134 = vmatpush1.msra.mxu0 %v75
    %135 = vmatprep.subr.mxu0 0.0
    %136 = vmatpush1.msra.mxu0 %v76
    %137 = vmatprep.subr.mxu0 0.0
    %138 = vmatpush1.msra.mxu0 %v77
    %139 = vmatprep.subr.mxu0 0.0
    %140 = vmatpush1.msra.mxu0 %v78
    %141 = vmatprep.subr.mxu0 0.0
    %142 = vmatpush1.msra.mxu0 %v79
    %143 = vmatprep.subr.mxu0 0.0
    %144 = vmatpush1.msra.mxu0 %v80
    %145 = vmatprep.subr.mxu0 0.0
    %146 = vmatpush1.msra.mxu0 %v81
    %147 = vmatprep.subr.mxu0 0.0
    %148 = vmatpush1.msra.mxu0 %v82
    %149 = vmatprep.subr.mxu0 0.0
    %150 = vmatpush1.msra.mxu0 %v83
    %151 = vmatprep.subr.mxu0 0.0
    %152 = vmatpush1.msra.mxu0 %v84
    %153 = vmatprep.subr.mxu0 0.0
    %154 = vmatpush1.msra.mxu0 %v85
    %155 = vmatprep.subr.mxu0 0.0
    %156 = vmatpush1.msra.mxu0 %v86
    %157 = vmatprep.subr.mxu0 0.0
    %158 = vmatpush1.msra.mxu0 %v87
    %159 = vmatprep.mubr.f32.mxu0 %v53
    %160 = vmatmul.mubr.f32.gmra.mrb[0].mxu0 %v52
    %v161 = vpop.f32.mrb[0].mxu0
    %v162 = vadd.f32 %v93, %v161
    %v163 = vpop.f32.mrb[0].mxu0
    %164 = vmatprep.mubr.f32.mxu0 %v55
    %165 = vmatmul.mubr.f32.gmra.mrb[0].mxu0 %v54
    %v166 = vpop.f32.mrb[0].mxu0
    %v167 = vadd.f32 %v93, %v166
    %v168 = vpop.f32.mrb[0].mxu0
    %169 = vdwg.mxu0
    %v170 = vmul.f32 %v162, 10.0
    %v171 = vmul.f32 %v167, 10.0
    %v172 = vmax.f32 %v170, 0.0
    %v173 = vmax.f32 %v171, 0.0
    %v174 = vand.u32 2147483647, %v170
    %v175 = vand.u32 2147483647, %v171
    %v176 = vsub.f32 0.0, %v174
    %v177 = vsub.f32 0.0, %v175
    %v178 = vmul.f32 %v176, 1.442695
    %v179 = vpow.pop %v178
    %v180 = vmul.f32 %v177, 1.442695
    %v181 = vpow.pop %v180
    %v182 = vadd.f32 %v179, 1.0
    %v183 = vlog2.pop %v182
    %v184 = vmul.f32 %v183, 0.6931472
    %v185 = vmul.f32 -0.5, %v179
    %v186 = vadd.f32 %v185, 1.0
    %v187 = vmul.f32 %v186, %v179
    %v188 = vand.u32 2147483647, %v179
    %vm189 = vcmp.lt.f32.partialorder %v188, 0.0004427343
    %v190 = vsel %vm189, %v187, %v184
    %v191 = vadd.f32 %v181, 1.0
    %v192 = vlog2.pop %v191
    %v193 = vmul.f32 %v192, 0.6931472
    %v194 = vmul.f32 -0.5, %v181
    %v195 = vadd.f32 %v194, 1.0
    %v196 = vmul.f32 %v195, %v181
    %v197 = vand.u32 2147483647, %v181
    %vm198 = vcmp.lt.f32.partialorder %v197, 0.0004427343
    %v199 = vsel %vm198, %v196, %v193
    %v200 = vadd.f32 %v172, %v190
    %v201 = vadd.f32 %v173, %v199
    %v202 = vmul.f32 %v200, 0.1
    %v203 = vmul.f32 %v201, 0.1
    %v204 = vlaneseq
    %v205 = vand.u32 %v204, 127
    %vm206 = vcmp.lt.s32.totalorder %v205, 100
    %v207 = vsel %vm206, %v202, 0.0
    %v208 = vsel %vm206, %v203, 0.0
    %v209 = vld [vmem:[%s3] sm:$0x1]
    %v211 = vlaneseq
    %v212 = vshrl.u32 %v211, 7
    %v213 = vsub.s32 0, %v212
    %v214 = vrot.slane %v209, %v213
    %v216 = vmul.f32 %v207, %v214
    %v217 = vmul.f32 %v208, %v214
    %218 = vadd.xlane.f32.xlu0 %v216
    %v219 = vpop.xlane.xlu0 %218
    %220 = vadd.xlane.f32.xlu0 %v217
    %v221 = vpop.xlane.xlu0 %220
    %v222 = vld [vmem:[#allocation2] sm:$0x1]
    %v224 = vlaneseq
    %v225 = vshrl.u32 %v224, 7
    %v226 = vsub.s32 0, %v225
    %v227 = vrot.slane %v222, %v226
    %v229 = vadd.f32 %v219, %v227
    %v230 = vadd.f32 %v221, %v227
    %vm231 = vcmask 7168
    %232 = vst.msk [vmem:[%s5] sm:$0xff] %vm231, %v229
    %233 = vst.msk [vmem:[%s5 + $0x8] sm:$0xff] %vm231, %v230
    %p234 = scmp.eq.s32.totalorder 0, 0
    // Predicated region
    $region30: #{predictor_forward.1} parent=1 // pred_check
      %p235 = pneg %p234
    $region31: #{predictor_forward.1} parent=1 // pred_check_branch
      %237 = sbr.rel (%p235) target = $region33
    $region32: #{predictor_forward.1} parent=1 // pred_region
      %v238 = vld [vmem:[#allocation5] sm:$0xff]
      %v239 = vld [vmem:[#allocation5 + $0x8] sm:$0xff]
      %v240 = vld [vmem:[#allocation5 + $0x10] sm:$0xff]
      %v241 = vld [vmem:[#allocation5 + $0x18] sm:$0xff]
      %v242 = vld [vmem:[#allocation5 + $0x20] sm:$0xff]
      %v243 = vld [vmem:[#allocation5 + $0x28] sm:$0xff]
      %v244 = vld [vmem:[#allocation5 + $0x30] sm:$0xff]
      %v245 = vld [vmem:[#allocation5 + $0x38] sm:$0xff]
      %v246 = vld [vmem:[#allocation5 + $0x40] sm:$0xff]
      %v247 = vld [vmem:[#allocation5 + $0x48] sm:$0xff]
      %v248 = vld [vmem:[#allocation5 + $0x50] sm:$0xff]
      %v249 = vld [vmem:[#allocation5 + $0x58] sm:$0xff]
      %v250 = vld [vmem:[#allocation5 + $0x60] sm:$0xff]
      %v251 = vld [vmem:[#allocation5 + $0x68] sm:$0xff]
      %v252 = vld [vmem:[#allocation5 + $0x70] sm:$0xff]
      %v253 = vld [vmem:[#allocation5 + $0x78] sm:$0xff]
      %v254 = vld [vmem:[#allocation5 + $0x80] sm:$0xff]
      %v255 = vld [vmem:[#allocation5 + $0x88] sm:$0xff]
      %v256 = vld [vmem:[#allocation5 + $0x90] sm:$0xff]
      %v257 = vld [vmem:[#allocation5 + $0x98] sm:$0xff]
      %v258 = vld [vmem:[#allocation5 + $0xa0] sm:$0xff]
      %v259 = vld [vmem:[#allocation5 + $0xa8] sm:$0xff]
      %v260 = vld [vmem:[#allocation5 + $0xb0] sm:$0xff]
      %v261 = vld [vmem:[#allocation5 + $0xb8] sm:$0xff]
      %v262 = vld [vmem:[#allocation5 + $0xc0] sm:$0xff]
      %v263 = vld [vmem:[#allocation5 + $0xc8] sm:$0xff]
      %v264 = vld [vmem:[#allocation5 + $0xd0] sm:$0xff]
      %v265 = vld [vmem:[#allocation5 + $0xd8] sm:$0xff]
      %v266 = vld [vmem:[#allocation5 + $0xe0] sm:$0xff]
      %v267 = vld [vmem:[#allocation5 + $0xe8] sm:$0xff]
      %v268 = vld [vmem:[#allocation5 + $0xf0] sm:$0xff]
      %v269 = vld [vmem:[#allocation5 + $0xf8] sm:$0xff]
      %v270 = vand.u32 2147483647, %v238
      %v271 = vand.u32 2147483647, %v239
      %v272 = vand.u32 2147483647, %v240
      %v273 = vand.u32 2147483647, %v241
      %v274 = vand.u32 2147483647, %v242
      %v275 = vand.u32 2147483647, %v243
      %v276 = vand.u32 2147483647, %v244
      %v277 = vand.u32 2147483647, %v245
      %v278 = vand.u32 2147483647, %v246
      %v279 = vand.u32 2147483647, %v247
      %v280 = vand.u32 2147483647, %v248
      %v281 = vand.u32 2147483647, %v249
      %v282 = vand.u32 2147483647, %v250
      %v283 = vand.u32 2147483647, %v251
      %v284 = vand.u32 2147483647, %v252
      %v285 = vand.u32 2147483647, %v253
      %v286 = vand.u32 2147483647, %v254
      %v287 = vand.u32 2147483647, %v255
      %v288 = vand.u32 2147483647, %v256
      %v289 = vand.u32 2147483647, %v257
      %v290 = vand.u32 2147483647, %v258
      %v291 = vand.u32 2147483647, %v259
      %v292 = vand.u32 2147483647, %v260
      %v293 = vand.u32 2147483647, %v261
      %v294 = vand.u32 2147483647, %v262
      %v295 = vand.u32 2147483647, %v263
      %v296 = vand.u32 2147483647, %v264
      %v297 = vand.u32 2147483647, %v265
      %v298 = vand.u32 2147483647, %v266
      %v299 = vand.u32 2147483647, %v267
      %v300 = vand.u32 2147483647, %v268
      %v301 = vand.u32 2147483647, %v269
      %v302 = vadd.f32 %v270, %v271
      %v303 = vadd.f32 %v302, %v272
      %v304 = vadd.f32 %v303, %v273
      %v305 = vadd.f32 %v304, %v274
      %v306 = vadd.f32 %v305, %v275
      %v307 = vadd.f32 %v306, %v276
      %v308 = vadd.f32 %v307, %v277
      %v309 = vadd.f32 %v308, %v278
      %v310 = vadd.f32 %v309, %v279
      %v311 = vadd.f32 %v310, %v280
      %v312 = vadd.f32 %v311, %v281
      %v313 = vadd.f32 %v312, %v282
      %v314 = vadd.f32 %v313, %v283
      %v315 = vadd.f32 %v314, %v284
      %v316 = vadd.f32 %v315, %v285
      %v317 = vadd.f32 %v316, %v286
      %v318 = vadd.f32 %v317, %v287
      %v319 = vadd.f32 %v318, %v288
      %v320 = vadd.f32 %v319, %v289
      %v321 = vadd.f32 %v320, %v290
      %v322 = vadd.f32 %v321, %v291
      %v323 = vadd.f32 %v322, %v292
      %v324 = vadd.f32 %v323, %v293
      %v325 = vadd.f32 %v324, %v294
      %v326 = vadd.f32 %v325, %v295
      %v327 = vadd.f32 %v326, %v296
      %v328 = vadd.f32 %v327, %v297
      %v329 = vadd.f32 %v328, %v298
      %v330 = vadd.f32 %v329, %v299
      %v331 = vadd.f32 %v330, %v300
      %v332 = vadd.f32 %v331, %v301
      %333 = vadd.xlane.f32.xlu0 %v332
      %v334 = vpop.xlane.xlu0 %333
      %v335 = vrot.slane %v334, 4
      %v336 = vadd.f32 %v334, %v335
      %v337 = vrot.slane %v336, 2
      %v338 = vadd.f32 %v336, %v337
      %v339 = vrot.slane %v338, 1
      %v340 = vadd.f32 %v338, %v339
      %s341 = vtos %v340
      %v342 = vand.u32 2147483647, %v209
      %vm343 = vcmask 1040384
      %v344 = vsel %vm343, %v342, 0.0
      %345 = vadd.xlane.f32.xlu0 %v344
      %v346 = vpop.xlane.xlu0 %345
      %v347 = vrot.slane %v346, 4
      %v348 = vadd.f32 %v346, %v347
      %v349 = vrot.slane %v348, 2
      %v350 = vadd.f32 %v348, %v349
      %v351 = vrot.slane %v350, 1
      %v352 = vadd.f32 %v350, %v351
      %s353 = vtos %v352
      %s354 = sadd.f32 %s341, %s353
      %v355 = vstv %s354
      %356 = vst [vmem:[%s6] sm:$0xff] %v355
    $region33: #{predictor_forward.1} parent=1 // pred_fallthru
      _
    %p357 = scmp.ne.s32.totalorder 0, 0
    // Predicated region
    $region34: #{predictor_forward.1} parent=1 // pred_check
      %p358 = pneg %p357
    $region35: #{predictor_forward.1} parent=1 // pred_check_branch
      %360 = sbr.rel (%p358) target = $region37
    $region36: #{predictor_forward.1} parent=1 // pred_region
      %361 = vst [vmem:[%s6] sm:$0xff] 0.0
    $region37: #{predictor_forward.1} parent=1 // pred_fallthru
      _
    // Predicated region
    $region38: #{predictor_forward.1} parent=1 // pred_check
      _
    $region39: #{predictor_forward.1} parent=1 // pred_check_branch
      %363 = sbr.rel (0) target = $region41
    $region40: #{predictor_forward.1} parent=1 // pred_region
      _
    $region41: #{predictor_forward.1} parent=1 // pred_fallthru
      _
    // Predicated region
    $region42: #{predictor_forward.1} parent=1 // pred_check
      _
    $region43: #{predictor_forward.1} parent=1 // pred_check_branch
      %365 = sbr.rel (0) target = $region45
    $region44: #{predictor_forward.1} parent=1 // pred_region
      _
    $region45: #{predictor_forward.1} parent=1 // pred_fallthru
      _
    // Predicated region
    $region46: #{predictor_forward.1} parent=1 // pred_check
      _
    $region47: #{predictor_forward.1} parent=1 // pred_check_branch
      %367 = sbr.rel (0) target = $region49
    $region48: #{predictor_forward.1} parent=1 // pred_region
      _
    $region49: #{predictor_forward.1} parent=1 // pred_fallthru
      _
    // Predicated region
    $region50: #{predictor_forward.1} parent=1 // pred_check
      _
    $region51: #{predictor_forward.1} parent=1 // pred_check_branch
      %369 = sbr.rel (0) target = $region53
    $region52: #{predictor_forward.1} parent=1 // pred_region
      _
    $region53: #{predictor_forward.1} parent=1 // pred_fallthru
      _
    %370 = vsyncpa [#allocation4], 1
    %371 = vsyncpa [#allocation6], 1

</llo_original>
